<compile_context>
chip_gen: v7x
topology: tpu7x:2x2x1
jax: 0.10.0
libtpu: 0.0.40
codegen_flags: <defaults>
</compile_context>

<pallas_src>
import functools

import jax
import jax.numpy as jnp
from jax.experimental import pallas as pl
from jax.experimental.pallas import tpu as pltpu


def _seg_head_kernel(x_ref, w_ref, b_ref, m_ref, o_ref, *,
                     W, K, Cin, Cout, HW, activation, matmul_dtype):
    # x_ref: (1, Cin, H*W)       lane-dense activations for this batch element
    # w_ref: (K*K, Cout, Cin)    per-tap conv weights (grid-invariant, DMA'd once)
    # b_ref: (Cout, 1)           bias
    # m_ref: (K*K, H*W)          1.0 inside the image, 0.0 where zero padding applies
    # o_ref: (1, Cout, H*W)      lane-dense output block
    p = K // 2
    x = x_ref[0]                          # (Cin, H*W)
    if matmul_dtype is not None:          # e.g. bf16 MXU inputs on v6e/v7x
        x = x.astype(matmul_dtype)
    masks = m_ref[...]                    # (K*K, H*W)

    acc = None                            # f32 (Cout, H*W) register accumulator
    for kh in range(K):                   # fully unrolled: K is a small static constant
        for kw in range(K):
            idx = kh * K + kw
            delta = (kh - p) * W + (kw - p)      # flat-index offset of this tap
            w_tap = w_ref[idx]                   # (Cout, Cin)
            if matmul_dtype is not None:
                w_tap = w_tap.astype(matmul_dtype)
            # Static lane roll (XLU): shifted[:, q] = x[:, (q + delta) mod H*W].
            shifted = x if delta == 0 else jnp.roll(x, -delta, axis=1)
            # Small MXU matmul, f32 accumulation.
            part = jnp.dot(w_tap, shifted, preferred_element_type=jnp.float32)
            # Mask the (Cout, H*W) *result*: zeros out-of-image (wrapped) positions,
            # which also implements the conv's "same" zero padding.  Cheaper than
            # masking the (Cin, H*W) input when Cout << Cin.  Center tap needs none.
            if delta != 0:
                part = part * masks[idx:idx + 1, :]
            acc = part if acc is None else acc + part

    acc = acc + b_ref[...]                # bias (Cout, 1) broadcast over lanes

    if activation == "sigmoid":
        acc = jax.nn.sigmoid(acc)         # EUP
    elif activation == "softmax":
        # PyTorch softmax over the channel dim (dim=1 in NCHW) == sublane axis here.
        mx = jnp.max(acc, axis=0, keepdims=True)
        e = jnp.exp(acc - mx)
        acc = e * pl.reciprocal(jnp.sum(e, axis=0, keepdims=True), approx=True)
    # activation is None -> identity

    o_ref[0] = acc.astype(o_ref.dtype)


def segmentation_head(x_nchw, weight, bias, *, activation=None, kernel_size=3,
                      matmul_dtype=None):
    """x_nchw: [N, Cin, H, W]; weight: [Cout, Cin, K, K]; bias: [Cout].

    Matches nn.Conv2d(padding=K//2) + activation. Returns [N, Cout, H, W].
    matmul_dtype=jnp.bfloat16 feeds the MXU bf16 inputs (f32 accumulation/postops).
    """
    assert activation in (None, "sigmoid", "softmax")
    N, Cin, H, W = x_nchw.shape
    Cout = weight.shape[0]
    K = kernel_size
    assert weight.shape == (Cout, Cin, K, K)
    p = K // 2
    assert H > p and W > p, "image must be larger than the conv halo"
    HW = H * W

    # Free metadata reshape (merging contiguous dims): NO transpose, NO jnp.pad pass.
    x_flat = x_nchw.reshape(N, Cin, HW)

    # Tiny parameter prep (O(K*K*Cin*Cout) elements):
    # w3[kh*K + kw] = weight[:, :, kh, kw]  -> (K*K, Cout, Cin)
    w3 = jnp.transpose(weight, (2, 3, 0, 1)).reshape(K * K, Cout, Cin).astype(jnp.float32)
    b2d = bias.reshape(Cout, 1).astype(jnp.float32)

    # Per-tap validity masks (K*K, H*W): 1.0 where the shifted source pixel lies
    # inside the image, 0.0 where the "same" zero padding applies.
    hh = jnp.arange(H, dtype=jnp.int32)[:, None]
    ww = jnp.arange(W, dtype=jnp.int32)[None, :]
    rows = []
    for kh in range(K):
        for kw in range(K):
            dh, dw = kh - p, kw - p
            valid = ((hh + dh >= 0) & (hh + dh < H) &
                     (ww + dw >= 0) & (ww + dw < W))
            rows.append(valid.reshape(1, HW))
    masks = jnp.concatenate(rows, axis=0).astype(jnp.float32)

    kernel = functools.partial(
        _seg_head_kernel, W=W, K=K, Cin=Cin, Cout=Cout, HW=HW,
        activation=activation, matmul_dtype=matmul_dtype)

    out_flat = pl.pallas_call(
        kernel,
        out_shape=jax.ShapeDtypeStruct((N, Cout, HW), x_nchw.dtype),
        grid_spec=pltpu.PrefetchScalarGridSpec(
            num_scalar_prefetch=0,
            grid=(N,),
            in_specs=[
                pl.BlockSpec((1, Cin, HW), lambda n: (n, 0, 0)),        # activations
                pl.BlockSpec((K * K, Cout, Cin), lambda n: (0, 0, 0)),  # per-tap weights
                pl.BlockSpec((Cout, 1), lambda n: (0, 0)),              # bias
                pl.BlockSpec((K * K, HW), lambda n: (0, 0)),            # border masks
            ],
            out_specs=pl.BlockSpec((1, Cout, HW), lambda n: (n, 0, 0)),
        ),
        compiler_params=pltpu.CompilerParams(
            # Batch axis is embarrassingly parallel -> both TensorCores on v7x get work.
            dimension_semantics=("parallel",),
            # Raise the scoped-VMEM limit (v5e default is only 16 MiB); safe on all gens.
            vmem_limit_bytes=32 * 1024 * 1024,
        ),
    )(x_flat, w3, b2d, masks)

    # TODO(synk): for very large H*W (e.g. 512x512 f32 on v7x's 64 MiB VMEM), tile the
    # flattened spatial axis across the grid with a halo'd manual DMA; at these sizes
    # whole-image blocks are far under budget now that the im2col slab is gone.

    return out_flat.reshape(N, Cout, H, W)   # free reshape back to NCHW


def _reference(x_nchw, weight, bias, activation):
    # Pure-JAX reference (lax conv) for correctness checking.
    out = jax.lax.conv_general_dilated(
        x_nchw, weight, window_strides=(1, 1), padding="SAME",
        dimension_numbers=("NCHW", "OIHW", "NCHW"))
    out = out + bias[None, :, None, None]
    if activation == "sigmoid":
        out = jax.nn.sigmoid(out)
    elif activation == "softmax":
        out = jax.nn.softmax(out, axis=1)
    return out


if __name__ == "__main__":
    key = jax.random.PRNGKey(0)
    N, Cin, Cout, H, W, K = 2, 4, 3, 16, 16, 3

    k1, k2, k3 = jax.random.split(key, 3)
    x = jax.random.normal(k1, (N, Cin, H, W), dtype=jnp.float32)
    # Deterministic synthetic Conv2d parameters (not a checkpoint load).
    weight = jax.random.normal(k2, (Cout, Cin, K, K), dtype=jnp.float32) * 0.1
    bias = jax.random.normal(k3, (Cout,), dtype=jnp.float32) * 0.1

    # (activation, matmul_dtype, tolerance). Softmax tolerance is looser because of
    # the approximate EUP reciprocal; bf16 is looser because of MXU input rounding.
    configs = [
        (None, None, 1e-4),
        ("sigmoid", None, 1e-4),
        ("softmax", None, 1e-2),
        (None, jnp.bfloat16, 5e-2),
    ]
    for activation, mm_dtype, tol in configs:
        out = segmentation_head(x, weight, bias, activation=activation,
                                kernel_size=K, matmul_dtype=mm_dtype)
        out = jax.block_until_ready(out)
        ref = jax.block_until_ready(_reference(x, weight, bias, activation))
        assert out.shape == (N, Cout, H, W)
        assert jnp.allclose(out, ref, atol=tol, rtol=tol), (
            f"mismatch vs reference: activation={activation}, matmul_dtype={mm_dtype}")

    print("KERNEL_OK")
</pallas_src>

<mosaic_0001>
module attributes {stable_mosaic.version = 11 : i64} {
  func.func @_seg_head_kernel(%arg0: i32, %arg1: memref<1x4x256xf32, #tpu.memory_space<vmem>>, %arg2: memref<9x3x4xf32, #tpu.memory_space<vmem>>, %arg3: memref<3x1xf32, #tpu.memory_space<vmem>>, %arg4: memref<9x256xf32, #tpu.memory_space<vmem>>, %arg5: memref<1x3x256xf32, #tpu.memory_space<vmem>>) attributes {dimension_semantics = [#tpu.dimension_semantics<parallel>], iteration_bounds = array<i64: 2>, scalar_prefetch = 0 : i64, scratch_operands = 0 : i64, tpu.core_type = #tpu.core_type<tc>, window_params = [{transform_indices = @transform_0, window_bounds = array<i64: 1, 4, 256>}, {pipeline_mode = #tpu.pipeline_mode<synchronous>, transform_indices = @transform_1, window_bounds = array<i64: 9, 3, 4>}, {pipeline_mode = #tpu.pipeline_mode<synchronous>, transform_indices = @transform_2, window_bounds = array<i64: 3, 1>}, {pipeline_mode = #tpu.pipeline_mode<synchronous>, transform_indices = @transform_3, window_bounds = array<i64: 9, 256>}, {transform_indices = @transform_4, window_bounds = array<i64: 1, 3, 256>}]} {
    %c0 = arith.constant 0 : index
    %c0_0 = arith.constant 0 : index
    %c0_1 = arith.constant 0 : index
    %0 = vector.load %arg1[%c0, %c0_0, %c0_1] : memref<1x4x256xf32, #tpu.memory_space<vmem>>, vector<1x4x256xf32>
    %1 = vector.shape_cast %0 : vector<1x4x256xf32> to vector<4x256xf32>
    %c0_2 = arith.constant 0 : index
    %c0_3 = arith.constant 0 : index
    %2 = vector.load %arg4[%c0_2, %c0_3] : memref<9x256xf32, #tpu.memory_space<vmem>>, vector<9x256xf32>
    %c0_4 = arith.constant 0 : index
    %c0_5 = arith.constant 0 : index
    %c0_6 = arith.constant 0 : index
    %3 = vector.load %arg2[%c0_4, %c0_5, %c0_6] : memref<9x3x4xf32, #tpu.memory_space<vmem>>, vector<1x3x4xf32>
    %4 = vector.shape_cast %3 : vector<1x3x4xf32> to vector<3x4xf32>
    %5 = vector.extract_strided_slice %1 {offsets = [0, 239], sizes = [4, 17], strides = [1, 1]} : vector<4x256xf32> to vector<4x17xf32>
    %6 = vector.extract_strided_slice %1 {offsets = [0, 0], sizes = [4, 239], strides = [1, 1]} : vector<4x256xf32> to vector<4x239xf32>
    %7 = tpu.concatenate %5, %6 in 1 : vector<4x17xf32>, vector<4x239xf32> -> vector<4x256xf32>
    %cst = arith.constant dense<0.000000e+00> : vector<3x256xf32>
    %8 = tpu.matmul %4, %7, %cst {dimension_numbers = #tpu.dot_dimension_numbers<[1], [0], [0], [1], [0, 0, 1, 1], [], []>} : vector<3x4xf32>, vector<4x256xf32>, vector<3x256xf32> -> vector<3x256xf32>
    %9 = vector.extract_strided_slice %2 {offsets = [0, 0], sizes = [1, 256], strides = [1, 1]} : vector<9x256xf32> to vector<1x256xf32>
    %10 = vector.broadcast %9 : vector<1x256xf32> to vector<3x256xf32>
    %11 = arith.mulf %8, %10 : vector<3x256xf32>
    %c1 = arith.constant 1 : index
    %c0_7 = arith.constant 0 : index
    %c0_8 = arith.constant 0 : index
    %12 = vector.load %arg2[%c1, %c0_7, %c0_8] : memref<9x3x4xf32, #tpu.memory_space<vmem>>, vector<1x3x4xf32>
    %13 = vector.shape_cast %12 : vector<1x3x4xf32> to vector<3x4xf32>
    %14 = vector.extract_strided_slice %1 {offsets = [0, 240], sizes = [4, 16], strides = [1, 1]} : vector<4x256xf32> to vector<4x16xf32>
    %15 = vector.extract_strided_slice %1 {offsets = [0, 0], sizes = [4, 240], strides = [1, 1]} : vector<4x256xf32> to vector<4x240xf32>
    %16 = tpu.concatenate %14, %15 in 1 : vector<4x16xf32>, vector<4x240xf32> -> vector<4x256xf32>
    %cst_9 = arith.constant dense<0.000000e+00> : vector<3x256xf32>
    %17 = tpu.matmul %13, %16, %cst_9 {dimension_numbers = #tpu.dot_dimension_numbers<[1], [0], [0], [1], [0, 0, 1, 1], [], []>} : vector<3x4xf32>, vector<4x256xf32>, vector<3x256xf32> -> vector<3x256xf32>
    %18 = vector.extract_strided_slice %2 {offsets = [1, 0], sizes = [1, 256], strides = [1, 1]} : vector<9x256xf32> to vector<1x256xf32>
    %19 = vector.broadcast %18 : vector<1x256xf32> to vector<3x256xf32>
    %20 = arith.mulf %17, %19 : vector<3x256xf32>
    %21 = arith.addf %11, %20 : vector<3x256xf32>
    %c2 = arith.constant 2 : index
    %c0_10 = arith.constant 0 : index
    %c0_11 = arith.constant 0 : index
    %22 = vector.load %arg2[%c2, %c0_10, %c0_11] : memref<9x3x4xf32, #tpu.memory_space<vmem>>, vector<1x3x4xf32>
    %23 = vector.shape_cast %22 : vector<1x3x4xf32> to vector<3x4xf32>
    %24 = vector.extract_strided_slice %1 {offsets = [0, 241], sizes = [4, 15], strides = [1, 1]} : vector<4x256xf32> to vector<4x15xf32>
    %25 = vector.extract_strided_slice %1 {offsets = [0, 0], sizes = [4, 241], strides = [1, 1]} : vector<4x256xf32> to vector<4x241xf32>
    %26 = tpu.concatenate %24, %25 in 1 : vector<4x15xf32>, vector<4x241xf32> -> vector<4x256xf32>
    %cst_12 = arith.constant dense<0.000000e+00> : vector<3x256xf32>
    %27 = tpu.matmul %23, %26, %cst_12 {dimension_numbers = #tpu.dot_dimension_numbers<[1], [0], [0], [1], [0, 0, 1, 1], [], []>} : vector<3x4xf32>, vector<4x256xf32>, vector<3x256xf32> -> vector<3x256xf32>
    %28 = vector.extract_strided_slice %2 {offsets = [2, 0], sizes = [1, 256], strides = [1, 1]} : vector<9x256xf32> to vector<1x256xf32>
    %29 = vector.broadcast %28 : vector<1x256xf32> to vector<3x256xf32>
    %30 = arith.mulf %27, %29 : vector<3x256xf32>
    %31 = arith.addf %21, %30 : vector<3x256xf32>
    %c3 = arith.constant 3 : index
    %c0_13 = arith.constant 0 : index
    %c0_14 = arith.constant 0 : index
    %32 = vector.load %arg2[%c3, %c0_13, %c0_14] : memref<9x3x4xf32, #tpu.memory_space<vmem>>, vector<1x3x4xf32>
    %33 = vector.shape_cast %32 : vector<1x3x4xf32> to vector<3x4xf32>
    %34 = vector.extract_strided_slice %1 {offsets = [0, 255], sizes = [4, 1], strides = [1, 1]} : vector<4x256xf32> to vector<4x1xf32>
    %35 = vector.extract_strided_slice %1 {offsets = [0, 0], sizes = [4, 255], strides = [1, 1]} : vector<4x256xf32> to vector<4x255xf32>
    %36 = tpu.concatenate %34, %35 in 1 : vector<4x1xf32>, vector<4x255xf32> -> vector<4x256xf32>
    %cst_15 = arith.constant dense<0.000000e+00> : vector<3x256xf32>
    %37 = tpu.matmul %33, %36, %cst_15 {dimension_numbers = #tpu.dot_dimension_numbers<[1], [0], [0], [1], [0, 0, 1, 1], [], []>} : vector<3x4xf32>, vector<4x256xf32>, vector<3x256xf32> -> vector<3x256xf32>
    %38 = vector.extract_strided_slice %2 {offsets = [3, 0], sizes = [1, 256], strides = [1, 1]} : vector<9x256xf32> to vector<1x256xf32>
    %39 = vector.broadcast %38 : vector<1x256xf32> to vector<3x256xf32>
    %40 = arith.mulf %37, %39 : vector<3x256xf32>
    %41 = arith.addf %31, %40 : vector<3x256xf32>
    %c4 = arith.constant 4 : index
    %c0_16 = arith.constant 0 : index
    %c0_17 = arith.constant 0 : index
    %42 = vector.load %arg2[%c4, %c0_16, %c0_17] : memref<9x3x4xf32, #tpu.memory_space<vmem>>, vector<1x3x4xf32>
    %43 = vector.shape_cast %42 : vector<1x3x4xf32> to vector<3x4xf32>
    %cst_18 = arith.constant dense<0.000000e+00> : vector<3x256xf32>
    %44 = tpu.matmul %43, %1, %cst_18 {dimension_numbers = #tpu.dot_dimension_numbers<[1], [0], [0], [1], [0, 0, 1, 1], [], []>} : vector<3x4xf32>, vector<4x256xf32>, vector<3x256xf32> -> vector<3x256xf32>
    %45 = arith.addf %41, %44 : vector<3x256xf32>
    %c5 = arith.constant 5 : index
    %c0_19 = arith.constant 0 : index
    %c0_20 = arith.constant 0 : index
    %46 = vector.load %arg2[%c5, %c0_19, %c0_20] : memref<9x3x4xf32, #tpu.memory_space<vmem>>, vector<1x3x4xf32>
    %47 = vector.shape_cast %46 : vector<1x3x4xf32> to vector<3x4xf32>
    %48 = vector.extract_strided_slice %1 {offsets = [0, 1], sizes = [4, 255], strides = [1, 1]} : vector<4x256xf32> to vector<4x255xf32>
    %49 = vector.extract_strided_slice %1 {offsets = [0, 0], sizes = [4, 1], strides = [1, 1]} : vector<4x256xf32> to vector<4x1xf32>
    %50 = tpu.concatenate %48, %49 in 1 : vector<4x255xf32>, vector<4x1xf32> -> vector<4x256xf32>
    %cst_21 = arith.constant dense<0.000000e+00> : vector<3x256xf32>
    %51 = tpu.matmul %47, %50, %cst_21 {dimension_numbers = #tpu.dot_dimension_numbers<[1], [0], [0], [1], [0, 0, 1, 1], [], []>} : vector<3x4xf32>, vector<4x256xf32>, vector<3x256xf32> -> vector<3x256xf32>
    %52 = vector.extract_strided_slice %2 {offsets = [5, 0], sizes = [1, 256], strides = [1, 1]} : vector<9x256xf32> to vector<1x256xf32>
    %53 = vector.broadcast %52 : vector<1x256xf32> to vector<3x256xf32>
    %54 = arith.mulf %51, %53 : vector<3x256xf32>
    %55 = arith.addf %45, %54 : vector<3x256xf32>
    %c6 = arith.constant 6 : index
    %c0_22 = arith.constant 0 : index
    %c0_23 = arith.constant 0 : index
    %56 = vector.load %arg2[%c6, %c0_22, %c0_23] : memref<9x3x4xf32, #tpu.memory_space<vmem>>, vector<1x3x4xf32>
    %57 = vector.shape_cast %56 : vector<1x3x4xf32> to vector<3x4xf32>
    %58 = vector.extract_strided_slice %1 {offsets = [0, 15], sizes = [4, 241], strides = [1, 1]} : vector<4x256xf32> to vector<4x241xf32>
    %59 = vector.extract_strided_slice %1 {offsets = [0, 0], sizes = [4, 15], strides = [1, 1]} : vector<4x256xf32> to vector<4x15xf32>
    %60 = tpu.concatenate %58, %59 in 1 : vector<4x241xf32>, vector<4x15xf32> -> vector<4x256xf32>
    %cst_24 = arith.constant dense<0.000000e+00> : vector<3x256xf32>
    %61 = tpu.matmul %57, %60, %cst_24 {dimension_numbers = #tpu.dot_dimension_numbers<[1], [0], [0], [1], [0, 0, 1, 1], [], []>} : vector<3x4xf32>, vector<4x256xf32>, vector<3x256xf32> -> vector<3x256xf32>
    %62 = vector.extract_strided_slice %2 {offsets = [6, 0], sizes = [1, 256], strides = [1, 1]} : vector<9x256xf32> to vector<1x256xf32>
    %63 = vector.broadcast %62 : vector<1x256xf32> to vector<3x256xf32>
    %64 = arith.mulf %61, %63 : vector<3x256xf32>
    %65 = arith.addf %55, %64 : vector<3x256xf32>
    %c7 = arith.constant 7 : index
    %c0_25 = arith.constant 0 : index
    %c0_26 = arith.constant 0 : index
    %66 = vector.load %arg2[%c7, %c0_25, %c0_26] : memref<9x3x4xf32, #tpu.memory_space<vmem>>, vector<1x3x4xf32>
    %67 = vector.shape_cast %66 : vector<1x3x4xf32> to vector<3x4xf32>
    %68 = vector.extract_strided_slice %1 {offsets = [0, 16], sizes = [4, 240], strides = [1, 1]} : vector<4x256xf32> to vector<4x240xf32>
    %69 = vector.extract_strided_slice %1 {offsets = [0, 0], sizes = [4, 16], strides = [1, 1]} : vector<4x256xf32> to vector<4x16xf32>
    %70 = tpu.concatenate %68, %69 in 1 : vector<4x240xf32>, vector<4x16xf32> -> vector<4x256xf32>
    %cst_27 = arith.constant dense<0.000000e+00> : vector<3x256xf32>
    %71 = tpu.matmul %67, %70, %cst_27 {dimension_numbers = #tpu.dot_dimension_numbers<[1], [0], [0], [1], [0, 0, 1, 1], [], []>} : vector<3x4xf32>, vector<4x256xf32>, vector<3x256xf32> -> vector<3x256xf32>
    %72 = vector.extract_strided_slice %2 {offsets = [7, 0], sizes = [1, 256], strides = [1, 1]} : vector<9x256xf32> to vector<1x256xf32>
    %73 = vector.broadcast %72 : vector<1x256xf32> to vector<3x256xf32>
    %74 = arith.mulf %71, %73 : vector<3x256xf32>
    %75 = arith.addf %65, %74 : vector<3x256xf32>
    %c8 = arith.constant 8 : index
    %c0_28 = arith.constant 0 : index
    %c0_29 = arith.constant 0 : index
    %76 = vector.load %arg2[%c8, %c0_28, %c0_29] : memref<9x3x4xf32, #tpu.memory_space<vmem>>, vector<1x3x4xf32>
    %77 = vector.shape_cast %76 : vector<1x3x4xf32> to vector<3x4xf32>
    %78 = vector.extract_strided_slice %1 {offsets = [0, 17], sizes = [4, 239], strides = [1, 1]} : vector<4x256xf32> to vector<4x239xf32>
    %79 = vector.extract_strided_slice %1 {offsets = [0, 0], sizes = [4, 17], strides = [1, 1]} : vector<4x256xf32> to vector<4x17xf32>
    %80 = tpu.concatenate %78, %79 in 1 : vector<4x239xf32>, vector<4x17xf32> -> vector<4x256xf32>
    %cst_30 = arith.constant dense<0.000000e+00> : vector<3x256xf32>
    %81 = tpu.matmul %77, %80, %cst_30 {dimension_numbers = #tpu.dot_dimension_numbers<[1], [0], [0], [1], [0, 0, 1, 1], [], []>} : vector<3x4xf32>, vector<4x256xf32>, vector<3x256xf32> -> vector<3x256xf32>
    %82 = vector.extract_strided_slice %2 {offsets = [8, 0], sizes = [1, 256], strides = [1, 1]} : vector<9x256xf32> to vector<1x256xf32>
    %83 = vector.broadcast %82 : vector<1x256xf32> to vector<3x256xf32>
    %84 = arith.mulf %81, %83 : vector<3x256xf32>
    %85 = arith.addf %75, %84 : vector<3x256xf32>
    %c0_31 = arith.constant 0 : index
    %c0_32 = arith.constant 0 : index
    %86 = vector.load %arg3[%c0_31, %c0_32] : memref<3x1xf32, #tpu.memory_space<vmem>>, vector<3x1xf32>
    %87 = vector.broadcast %86 : vector<3x1xf32> to vector<3x256xf32>
    %88 = arith.addf %85, %87 : vector<3x256xf32>
    %c0_33 = arith.constant 0 : index
    %c0_34 = arith.constant 0 : index
    %c0_35 = arith.constant 0 : index
    %89 = vector.load %arg5[%c0_33, %c0_34, %c0_35] : memref<1x3x256xf32, #tpu.memory_space<vmem>>, vector<1x3x256xf32>
    %90 = vector.shape_cast %89 : vector<1x3x256xf32> to vector<3x256xf32>
    %91 = vector.shape_cast %88 : vector<3x256xf32> to vector<1x3x256xf32>
    tpu.vector_store %arg5[%c0_33, %c0_34, %c0_35], %91 {strides = array<i32>} : memref<1x3x256xf32, #tpu.memory_space<vmem>>, vector<1x3x256xf32>,
    return
  }
  func.func @transform_0(%arg0: i32) -> (i32, i32, i32) {
    %c0_i32 = arith.constant 0 : i32
    %c0_i32_0 = arith.constant 0 : i32
    %c0_i32_1 = arith.constant 0 : i32
    return %arg0, %c0_i32, %c0_i32_0 : i32, i32, i32
  }
  func.func @transform_1(%arg0: i32) -> (i32, i32, i32) {
    %c0_i32 = arith.constant 0 : i32
    %c0_i32_0 = arith.constant 0 : i32
    %c0_i32_1 = arith.constant 0 : i32
    %c0_i32_2 = arith.constant 0 : i32
    return %c0_i32, %c0_i32_0, %c0_i32_1 : i32, i32, i32
  }
  func.func @transform_2(%arg0: i32) -> (i32, i32) {
    %c0_i32 = arith.constant 0 : i32
    %c0_i32_0 = arith.constant 0 : i32
    %c0_i32_1 = arith.constant 0 : i32
    return %c0_i32, %c0_i32_0 : i32, i32
  }
  func.func @transform_3(%arg0: i32) -> (i32, i32) {
    %c0_i32 = arith.constant 0 : i32
    %c0_i32_0 = arith.constant 0 : i32
    %c0_i32_1 = arith.constant 0 : i32
    return %c0_i32, %c0_i32_0 : i32, i32
  }
  func.func @transform_4(%arg0: i32) -> (i32, i32, i32) {
    %c0_i32 = arith.constant 0 : i32
    %c0_i32_0 = arith.constant 0 : i32
    %c0_i32_1 = arith.constant 0 : i32
    return %arg0, %c0_i32, %c0_i32_0 : i32, i32, i32
  }
}

</mosaic_0001>

<llo_original>
// kernel: tpu_custom_call.1
$region0: #{tpu_custom_call.1}
  #allocation0 [shape = 'u32[]', space=smem, size = 0x4, offset = 0x4, fixed_abs, tag = 'smem constant byte address 0x4 - core index']
  #allocation1 [shape = 'u32[144,128]{1,0:T(1,128)}', space=vmem, size = 0x12000, scoped, tag = 'internal scratch']
  %s0 = inlined_call_operand.vmem [shape: f32[2,4,256], index: 0, kind: input, shape index: {}]
  %s1 = inlined_call_operand.vmem [shape: f32[9,3,4], index: 1, kind: input, shape index: {}]
  %s2 = inlined_call_operand.vmem [shape: f32[3,1], index: 2, kind: input, shape index: {}]
  %s3 = inlined_call_operand.vmem [shape: f32[9,256], index: 3, kind: input, shape index: {}]
  %s4 = inlined_call_operand.vmem [shape: f32[2,3,256], index: 4, kind: output, shape index: {}]
  %s5 = sld [smem:[#allocation0]]
  $region49: #{tpu_custom_call.1} parent=0
    _
  %s7 = ssub.s32 1, %s5
  %s8 = scalar_select 0, %s7, %s5
  loop: start=0, step=1, limit=4
  $region2: #{tpu_custom_call.1} parent=0 // loop_pre_header
    _
  $region3: #{tpu_custom_call.1} parent=0 // loop_header
    %s10 = sphi 0, %s14
    %p11 = scmp.ge.s32.totalorder %s10, 4
    %s20 = sphi 0, %s22
    %s23 = sphi 0, %s20
    %s24 = sphi 0, %s23
    %s40 = sphi 0, %s24
    %s44 = sphi 0, %s44
    %s46 = sphi 0, %s44
    %s47 = sphi 0, %s46
    %s61 = sphi 0, %s47
    %s65 = sphi 0, %s65
    %s67 = sphi 0, %s65
    %s68 = sphi 0, %s67
    %s82 = sphi 0, %s68
    %s86 = sphi 0, %s86
    %s88 = sphi 0, %s86
    %s89 = sphi 0, %s88
    %s103 = sphi 0, %s89
    %s109 = sphi 0, %s111
    %s112 = sphi 0, %s109
    %s113 = sphi 0, %s112
    %s129 = sphi 0, %s113
  $region4: #{tpu_custom_call.1} parent=0 // loop_header_branch
    %13 = sbr.rel (%p11) target = $region8
  $region5: #{tpu_custom_call.1} parent=0 // loop_body
    %s15 = ssub.s32 %s10, 1
    %s16 = ssub.s32 %s10, 2
    %s17 = sadd.s32 %s10, 1
    %s18 = ssub.s32 %s10, %s17
    %p19 = scmp.eq.s32.totalorder %s18, 0
    %s21 = sadd.s32 %s20, 1
    %s22 = scalar_select %p19, %s20, %s21
    %p25 = pneg %p19
    %p26 = scmp.eq.s32.totalorder %s10, 1
    %p27 = por %p25, %p26
    %p28 = scmp.ne.s32.totalorder %s20, %s23
    %p29 = scmp.eq.s32.totalorder %s10, 0
    %p30 = por %p28, %p29
    %p31 = scmp.ne.s32.totalorder %s20, %s23
    %p32 = scmp.eq.s32.totalorder %s15, 1
    %p33 = por %p31, %p32
    %p34 = scmp.ne.s32.totalorder %s23, %s24
    %p35 = scmp.eq.s32.totalorder %s15, 0
    %p36 = por %p34, %p35
    %p37 = scmp.ne.s32.totalorder %s23, %s24
    %p38 = scmp.eq.s32.totalorder %s16, 1
    %p39 = por %p37, %p38
    %p41 = scmp.ne.s32.totalorder %s24, %s40
    %p42 = scmp.eq.s32.totalorder %s16, 0
    %p43 = por %p41, %p42
    %s45 = sadd.s32 %s44, 1
    %p48 = scmp.eq.s32.totalorder %s10, 1
    %p49 = scmp.ne.s32.totalorder %s44, %s46
    %p50 = scmp.eq.s32.totalorder %s10, 0
    %p51 = por %p49, %p50
    %p52 = scmp.ne.s32.totalorder %s44, %s46
    %p53 = scmp.eq.s32.totalorder %s15, 1
    %p54 = por %p52, %p53
    %p55 = scmp.ne.s32.totalorder %s46, %s47
    %p56 = scmp.eq.s32.totalorder %s15, 0
    %p57 = por %p55, %p56
    %p58 = scmp.ne.s32.totalorder %s46, %s47
    %p59 = scmp.eq.s32.totalorder %s16, 1
    %p60 = por %p58, %p59
    %p62 = scmp.ne.s32.totalorder %s47, %s61
    %p63 = scmp.eq.s32.totalorder %s16, 0
    %p64 = por %p62, %p63
    %s66 = sadd.s32 %s65, 1
    %p69 = scmp.eq.s32.totalorder %s10, 1
    %p70 = scmp.ne.s32.totalorder %s65, %s67
    %p71 = scmp.eq.s32.totalorder %s10, 0
    %p72 = por %p70, %p71
    %p73 = scmp.ne.s32.totalorder %s65, %s67
    %p74 = scmp.eq.s32.totalorder %s15, 1
    %p75 = por %p73, %p74
    %p76 = scmp.ne.s32.totalorder %s67, %s68
    %p77 = scmp.eq.s32.totalorder %s15, 0
    %p78 = por %p76, %p77
    %p79 = scmp.ne.s32.totalorder %s67, %s68
    %p80 = scmp.eq.s32.totalorder %s16, 1
    %p81 = por %p79, %p80
    %p83 = scmp.ne.s32.totalorder %s68, %s82
    %p84 = scmp.eq.s32.totalorder %s16, 0
    %p85 = por %p83, %p84
    %s87 = sadd.s32 %s86, 1
    %p90 = scmp.eq.s32.totalorder %s10, 1
    %p91 = scmp.ne.s32.totalorder %s86, %s88
    %p92 = scmp.eq.s32.totalorder %s10, 0
    %p93 = por %p91, %p92
    %p94 = scmp.ne.s32.totalorder %s86, %s88
    %p95 = scmp.eq.s32.totalorder %s15, 1
    %p96 = por %p94, %p95
    %p97 = scmp.ne.s32.totalorder %s88, %s89
    %p98 = scmp.eq.s32.totalorder %s15, 0
    %p99 = por %p97, %p98
    %p100 = scmp.ne.s32.totalorder %s88, %s89
    %p101 = scmp.eq.s32.totalorder %s16, 1
    %p102 = por %p100, %p101
    %p104 = scmp.ne.s32.totalorder %s89, %s103
    %p105 = scmp.eq.s32.totalorder %s16, 0
    %p106 = por %p104, %p105
    %s107 = ssub.s32 %s10, %s17
    %p108 = scmp.eq.s32.totalorder %s107, 0
    %s110 = sadd.s32 %s109, 1
    %s111 = scalar_select %p108, %s109, %s110
    %p114 = pneg %p108
    %p115 = scmp.eq.s32.totalorder %s10, 1
    %p116 = por %p114, %p115
    %p117 = scmp.ne.s32.totalorder %s109, %s112
    %p118 = scmp.eq.s32.totalorder %s10, 0
    %p119 = por %p117, %p118
    %p120 = scmp.ne.s32.totalorder %s109, %s112
    %p121 = scmp.eq.s32.totalorder %s15, 1
    %p122 = por %p120, %p121
    %p123 = scmp.ne.s32.totalorder %s112, %s113
    %p124 = scmp.eq.s32.totalorder %s15, 0
    %p125 = por %p123, %p124
    %p126 = scmp.ne.s32.totalorder %s112, %s113
    %p127 = scmp.eq.s32.totalorder %s16, 1
    %p128 = por %p126, %p127
    %p130 = scmp.ne.s32.totalorder %s113, %s129
    %p131 = scmp.eq.s32.totalorder %s16, 0
    %p132 = por %p130, %p131
    %p133 = scmp.le.s32.totalorder 1, %s10
    %p134 = scmp.lt.s32.totalorder %s10, 3
    %p135 = pnand %p133, %p134
    %p136 = pneg %p135
    // Predicated region
    $region9: #{tpu_custom_call.1} parent=5 // pred_check
      _
    $region10: #{tpu_custom_call.1} parent=5 // pred_check_branch
      %138 = sbr.rel (%p135) target = $region12
    $region11: #{tpu_custom_call.1} parent=5 // pred_region
      %s139 = ssub.s32 %s10, 1
      // Predicated region
      $region13: #{tpu_custom_call.1} parent=11 // pred_check
        %p140 = pneg %p57
      $region14: #{tpu_custom_call.1} parent=11 // pred_check_branch
        %142 = sbr.rel (%p140) target = $region16
      $region15: #{tpu_custom_call.1} parent=11 // pred_region
        _
      $region16: #{tpu_custom_call.1} parent=11 // pred_fallthru
        _
      // Predicated region
      $region17: #{tpu_custom_call.1} parent=11 // pred_check
        %p143 = pneg %p78
      $region18: #{tpu_custom_call.1} parent=11 // pred_check_branch
        %145 = sbr.rel (%p143) target = $region20
      $region19: #{tpu_custom_call.1} parent=11 // pred_region
        _
      $region20: #{tpu_custom_call.1} parent=11 // pred_fallthru
        _
      // Predicated region
      $region21: #{tpu_custom_call.1} parent=11 // pred_check
        %p146 = pneg %p99
      $region22: #{tpu_custom_call.1} parent=11 // pred_check_branch
        %148 = sbr.rel (%p146) target = $region24
      $region23: #{tpu_custom_call.1} parent=11 // pred_region
        _
      $region24: #{tpu_custom_call.1} parent=11 // pred_fallthru
        _
    $region12: #{tpu_custom_call.1} parent=5 // pred_fallthru
      _
    %p149 = scmp.lt.s32.totalorder %s10, 2
    // Predicated region
    $region25: #{tpu_custom_call.1} parent=5 // pred_check
      %p150 = pneg %p149
    $region26: #{tpu_custom_call.1} parent=5 // pred_check_branch
      %152 = sbr.rel (%p150) target = $region28
    $region27: #{tpu_custom_call.1} parent=5 // pred_region
      // Predicated region
      $region29: #{tpu_custom_call.1} parent=27 // pred_check
        %p153 = pneg %p30
      $region30: #{tpu_custom_call.1} parent=27 // pred_check_branch
        %155 = sbr.rel (%p153) target = $region32
      $region31: #{tpu_custom_call.1} parent=27 // pred_region
        %p156 = scmp.lt.s32.totalorder %s10, 1
        %s157 = scalar_select %p156, %s10, 1
        %s158 = smul.addr %s157, 2
        %s159 = smul.addr %s158, 4
        %s160 = scalar_lea.vmem %s0, %s159
      $region32: #{tpu_custom_call.1} parent=27 // pred_fallthru
        _
    $region28: #{tpu_custom_call.1} parent=5 // pred_fallthru
      _
    %p161 = scmp.le.s32.totalorder 1, %s10
    %p162 = scmp.lt.s32.totalorder %s10, 3
    %p163 = pnand %p161, %p162
    %p164 = pneg %p163
    // Predicated region
    $region33: #{tpu_custom_call.1} parent=5 // pred_check
      _
    $region34: #{tpu_custom_call.1} parent=5 // pred_check_branch
      %166 = sbr.rel (%p163) target = $region36
    $region35: #{tpu_custom_call.1} parent=5 // pred_region
      %s167 = ssub.s32 %s10, 1
      %p168 = scmp.lt.s32.totalorder %s15, 1
      %s169 = scalar_select %p168, %s15, 1
      %s170 = smul.addr %s169, 2
      %s171 = smul.addr %s170, 4
      %s172 = scalar_lea.vmem %s0, %s171
      %p173 = pneg %p36
      %p174 = pneg %p33
      %p175 = pneg %p57
      %p176 = pneg %p54
      %p177 = pneg %p78
      %p178 = pneg %p75
      %p179 = pneg %p99
      %p180 = pneg %p96
      %p181 = pneg %p125
      %p182 = pneg %p122
      %p183 = scmp.lt.s32.totalorder %s15, 1
      %s184 = scalar_select %p183, %s15, 1
      %s185 = smul.addr %s184, 2
      %s186 = smul.addr %s185, 4
      %s187 = scalar_lea.vmem %s4, %s186
      %p188 = scmp.lt.s32.totalorder %s15, 1
      %s189 = scalar_select %p188, %s15, 1
      %s190 = smul.addr %s189, 2
      %s191 = smul.addr %s190, 4
      %s192 = scalar_lea.vmem %s0, %s191
      %p193 = scmp.lt.s32.totalorder %s15, 1
      %s194 = scalar_select %p193, %s15, 1
      %s195 = smul.addr %s194, 2
      %s196 = smul.addr %s195, 4
      %s197 = scalar_lea.vmem %s4, %s196
      %v198 = vld [vmem:[%s192] sm:$0xff]
      %v199 = vld [vmem:[%s3] sm:$0xff]
      %v200 = vld [vmem:[%s3 + $0x8] sm:$0xff]
      %v201 = vld [vmem:[%s3 + $0x10] sm:$0x1]
      %v202 = vld [vmem:[%s3 + $0x18] sm:$0x1]
      %v203 = vld [vmem:[%s1] sm:$0x7]
      %v205 = vcombine.high %v198, %v198
      %206 = vrot.lane.b32.xlu0 %v205, 17
      %v207 = vpop.permute.xlu0 %206
      %209 = vrot.lane.b32.xlu0 %v198, 17
      %v210 = vpop.permute.xlu0 %209
      %vm211 = vcmask 138240
      %v212 = vsel %vm211, %v210, %v207
      %v214 = vsel %vm211, %v207, %v210
      %vm215 = vcmask 31744
      %v217 = vsel %vm215, %v203, 0
      %vm219 = vcmask 1043456
      %v221 = vsel %vm219, %v214, 0
      %v223 = vsel %vm219, %v212, 0
      %225 = vmatprep.subr.mxu0 %v223
      %226 = vmatpush1.msra.mxu0 %v221
      %227 = vmatprep.subr.mxu0 0.0
      %228 = vmatpush1.msra.mxu0 0.0
      %229 = vmatprep.subr.mxu0 0.0
      %230 = vmatpush1.msra.mxu0 0.0
      %231 = vmatprep.subr.mxu0 0.0
      %232 = vmatpush1.msra.mxu0 0.0
      %233 = vmatprep.subr.mxu0 0.0
      %234 = vmatpush1.msra.mxu0 0.0
      %235 = vmatprep.subr.mxu0 0.0
      %236 = vmatpush1.msra.mxu0 0.0
      %237 = vmatprep.subr.mxu0 0.0
      %238 = vmatpush1.msra.mxu0 0.0
      %239 = vmatprep.subr.mxu0 0.0
      %240 = vmatpush1.msra.mxu0 0.0
      %241 = vmatprep.subr.mxu0 0.0
      %242 = vmatpush1.msra.mxu0 0.0
      %243 = vmatprep.subr.mxu0 0.0
      %244 = vmatpush1.msra.mxu0 0.0
      %245 = vmatprep.subr.mxu0 0.0
      %246 = vmatpush1.msra.mxu0 0.0
      %247 = vmatprep.subr.mxu0 0.0
      %248 = vmatpush1.msra.mxu0 0.0
      %249 = vmatprep.subr.mxu0 0.0
      %250 = vmatpush1.msra.mxu0 0.0
      %251 = vmatprep.subr.mxu0 0.0
      %252 = vmatpush1.msra.mxu0 0.0
      %253 = vmatprep.subr.mxu0 0.0
      %254 = vmatpush1.msra.mxu0 0.0
      %255 = vmatprep.subr.mxu0 0.0
      %256 = vmatpush1.msra.mxu0 0.0
      %257 = vmatprep.subr.mxu0 0.0
      %258 = vmatpush1.msra.mxu0 0.0
      %259 = vmatprep.subr.mxu0 0.0
      %260 = vmatpush1.msra.mxu0 0.0
      %261 = vmatprep.subr.mxu0 0.0
      %262 = vmatpush1.msra.mxu0 0.0
      %263 = vmatprep.subr.mxu0 0.0
      %264 = vmatpush1.msra.mxu0 0.0
      %265 = vmatprep.subr.mxu0 0.0
      %266 = vmatpush1.msra.mxu0 0.0
      %267 = vmatprep.subr.mxu0 0.0
      %268 = vmatpush1.msra.mxu0 0.0
      %269 = vmatprep.subr.mxu0 0.0
      %270 = vmatpush1.msra.mxu0 0.0
      %271 = vmatprep.subr.mxu0 0.0
      %272 = vmatpush1.msra.mxu0 0.0
      %273 = vmatprep.subr.mxu0 0.0
      %274 = vmatpush1.msra.mxu0 0.0
      %275 = vmatprep.subr.mxu0 0.0
      %276 = vmatpush1.msra.mxu0 0.0
      %277 = vmatprep.subr.mxu0 0.0
      %278 = vmatpush1.msra.mxu0 0.0
      %279 = vmatprep.subr.mxu0 0.0
      %280 = vmatpush1.msra.mxu0 0.0
      %281 = vmatprep.subr.mxu0 0.0
      %282 = vmatpush1.msra.mxu0 0.0
      %283 = vmatprep.subr.mxu0 0.0
      %284 = vmatpush1.msra.mxu0 0.0
      %285 = vmatprep.subr.mxu0 0.0
      %286 = vmatpush1.msra.mxu0 0.0
      %287 = vmatprep.subr.mxu0 0.0
      %288 = vmatpush1.msra.mxu0 0.0
      %289 = vmatprep.mubr.f32.mxu0 0.0
      %290 = vmatmul.mubr.f32.gmra.mrb[0].mxu0 %v217
      %v291 = vpop.f32.mrb[0].mxu0
      %v292 = vadd.f32 0.0, %v291
      %v293 = vpop.f32.mrb[0].mxu0
      %v294 = vadd.f32 0.0, %v293
      %295 = vdwg.mxu0
      %v296 = vlaneseq
      %v297 = vshrl.u32 %v296, 7
      %v298 = vsub.s32 0, %v297
      %v299 = vrot.slane %v199, %v298
      %v300 = vlaneseq
      %v301 = vshrl.u32 %v300, 7
      %v302 = vsub.s32 0, %v301
      %v303 = vrot.slane %v200, %v302
      %v304 = vmul.f32 %v292, %v299
      %v305 = vmul.f32 %v294, %v303
      %s306 = scalar_lea.vmem %s1, 4
      %v307 = vld [vmem:[%s306] sm:$0x7]
      %308 = vrot.lane.b32.xlu0 %v205, 16
      %v309 = vpop.permute.xlu0 %308
      %311 = vrot.lane.b32.xlu0 %v198, 16
      %v312 = vpop.permute.xlu0 %311
      %vm313 = vcmask 130048
      %v314 = vsel %vm313, %v312, %v309
      %v316 = vsel %vm313, %v309, %v312
      %v318 = vsel %vm215, %v307, 0
      %v321 = vsel %vm219, %v316, 0
      %v323 = vsel %vm219, %v314, 0
      %325 = vmatprep.subr.mxu0 %v323
      %326 = vmatpush1.msra.mxu0 %v321
      %327 = vmatprep.subr.mxu0 0.0
      %328 = vmatpush1.msra.mxu0 0.0
      %329 = vmatprep.subr.mxu0 0.0
      %330 = vmatpush1.msra.mxu0 0.0
      %331 = vmatprep.subr.mxu0 0.0
      %332 = vmatpush1.msra.mxu0 0.0
      %333 = vmatprep.subr.mxu0 0.0
      %334 = vmatpush1.msra.mxu0 0.0
      %335 = vmatprep.subr.mxu0 0.0
      %336 = vmatpush1.msra.mxu0 0.0
      %337 = vmatprep.subr.mxu0 0.0
      %338 = vmatpush1.msra.mxu0 0.0
      %339 = vmatprep.subr.mxu0 0.0
      %340 = vmatpush1.msra.mxu0 0.0
      %341 = vmatprep.subr.mxu0 0.0
      %342 = vmatpush1.msra.mxu0 0.0
      %343 = vmatprep.subr.mxu0 0.0
      %344 = vmatpush1.msra.mxu0 0.0
      %345 = vmatprep.subr.mxu0 0.0
      %346 = vmatpush1.msra.mxu0 0.0
      %347 = vmatprep.subr.mxu0 0.0
      %348 = vmatpush1.msra.mxu0 0.0
      %349 = vmatprep.subr.mxu0 0.0
      %350 = vmatpush1.msra.mxu0 0.0
      %351 = vmatprep.subr.mxu0 0.0
      %352 = vmatpush1.msra.mxu0 0.0
      %353 = vmatprep.subr.mxu0 0.0
      %354 = vmatpush1.msra.mxu0 0.0
      %355 = vmatprep.subr.mxu0 0.0
      %356 = vmatpush1.msra.mxu0 0.0
      %357 = vmatprep.subr.mxu0 0.0
      %358 = vmatpush1.msra.mxu0 0.0
      %359 = vmatprep.subr.mxu0 0.0
      %360 = vmatpush1.msra.mxu0 0.0
      %361 = vmatprep.subr.mxu0 0.0
      %362 = vmatpush1.msra.mxu0 0.0
      %363 = vmatprep.subr.mxu0 0.0
      %364 = vmatpush1.msra.mxu0 0.0
      %365 = vmatprep.subr.mxu0 0.0
      %366 = vmatpush1.msra.mxu0 0.0
      %367 = vmatprep.subr.mxu0 0.0
      %368 = vmatpush1.msra.mxu0 0.0
      %369 = vmatprep.subr.mxu0 0.0
      %370 = vmatpush1.msra.mxu0 0.0
      %371 = vmatprep.subr.mxu0 0.0
      %372 = vmatpush1.msra.mxu0 0.0
      %373 = vmatprep.subr.mxu0 0.0
      %374 = vmatpush1.msra.mxu0 0.0
      %375 = vmatprep.subr.mxu0 0.0
      %376 = vmatpush1.msra.mxu0 0.0
      %377 = vmatprep.subr.mxu0 0.0
      %378 = vmatpush1.msra.mxu0 0.0
      %379 = vmatprep.subr.mxu0 0.0
      %380 = vmatpush1.msra.mxu0 0.0
      %381 = vmatprep.subr.mxu0 0.0
      %382 = vmatpush1.msra.mxu0 0.0
      %383 = vmatprep.subr.mxu0 0.0
      %384 = vmatpush1.msra.mxu0 0.0
      %385 = vmatprep.subr.mxu0 0.0
      %386 = vmatpush1.msra.mxu0 0.0
      %387 = vmatprep.subr.mxu0 0.0
      %388 = vmatpush1.msra.mxu0 0.0
      %389 = vmatprep.mubr.f32.mxu0 0.0
      %390 = vmatmul.mubr.f32.gmra.mrb[0].mxu0 %v318
      %v391 = vpop.f32.mrb[0].mxu0
      %v392 = vadd.f32 0.0, %v391
      %v393 = vpop.f32.mrb[0].mxu0
      %v394 = vadd.f32 0.0, %v393
      %395 = vdwg.mxu0
      %v396 = vlaneseq
      %v397 = vshrl.u32 %v396, 7
      %v398 = vsub.s32 1, %v397
      %v399 = vrot.slane %v199, %v398
      %v400 = vlaneseq
      %v401 = vshrl.u32 %v400, 7
      %v402 = vsub.s32 1, %v401
      %v403 = vrot.slane %v200, %v402
      %v404 = vmul.f32 %v392, %v399
      %v405 = vmul.f32 %v394, %v403
      %v406 = vadd.f32 %v304, %v404
      %v407 = vadd.f32 %v305, %v405
      %s408 = scalar_lea.vmem %s1, 8
      %v409 = vld [vmem:[%s408] sm:$0x7]
      %410 = vrot.lane.b32.xlu0 %v205, 15
      %v411 = vpop.permute.xlu0 %410
      %413 = vrot.lane.b32.xlu0 %v198, 15
      %v414 = vpop.permute.xlu0 %413
      %vm415 = vcmask 121856
      %v416 = vsel %vm415, %v414, %v411
      %v418 = vsel %vm415, %v411, %v414
      %v420 = vsel %vm215, %v409, 0
      %v423 = vsel %vm219, %v418, 0
      %v425 = vsel %vm219, %v416, 0
      %427 = vmatprep.subr.mxu0 %v425
      %428 = vmatpush1.msra.mxu0 %v423
      %429 = vmatprep.subr.mxu0 0.0
      %430 = vmatpush1.msra.mxu0 0.0
      %431 = vmatprep.subr.mxu0 0.0
      %432 = vmatpush1.msra.mxu0 0.0
      %433 = vmatprep.subr.mxu0 0.0
      %434 = vmatpush1.msra.mxu0 0.0
      %435 = vmatprep.subr.mxu0 0.0
      %436 = vmatpush1.msra.mxu0 0.0
      %437 = vmatprep.subr.mxu0 0.0
      %438 = vmatpush1.msra.mxu0 0.0
      %439 = vmatprep.subr.mxu0 0.0
      %440 = vmatpush1.msra.mxu0 0.0
      %441 = vmatprep.subr.mxu0 0.0
      %442 = vmatpush1.msra.mxu0 0.0
      %443 = vmatprep.subr.mxu0 0.0
      %444 = vmatpush1.msra.mxu0 0.0
      %445 = vmatprep.subr.mxu0 0.0
      %446 = vmatpush1.msra.mxu0 0.0
      %447 = vmatprep.subr.mxu0 0.0
      %448 = vmatpush1.msra.mxu0 0.0
      %449 = vmatprep.subr.mxu0 0.0
      %450 = vmatpush1.msra.mxu0 0.0
      %451 = vmatprep.subr.mxu0 0.0
      %452 = vmatpush1.msra.mxu0 0.0
      %453 = vmatprep.subr.mxu0 0.0
      %454 = vmatpush1.msra.mxu0 0.0
      %455 = vmatprep.subr.mxu0 0.0
      %456 = vmatpush1.msra.mxu0 0.0
      %457 = vmatprep.subr.mxu0 0.0
      %458 = vmatpush1.msra.mxu0 0.0
      %459 = vmatprep.subr.mxu0 0.0
      %460 = vmatpush1.msra.mxu0 0.0
      %461 = vmatprep.subr.mxu0 0.0
      %462 = vmatpush1.msra.mxu0 0.0
      %463 = vmatprep.subr.mxu0 0.0
      %464 = vmatpush1.msra.mxu0 0.0
      %465 = vmatprep.subr.mxu0 0.0
      %466 = vmatpush1.msra.mxu0 0.0
      %467 = vmatprep.subr.mxu0 0.0
      %468 = vmatpush1.msra.mxu0 0.0
      %469 = vmatprep.subr.mxu0 0.0
      %470 = vmatpush1.msra.mxu0 0.0
      %471 = vmatprep.subr.mxu0 0.0
      %472 = vmatpush1.msra.mxu0 0.0
      %473 = vmatprep.subr.mxu0 0.0
      %474 = vmatpush1.msra.mxu0 0.0
      %475 = vmatprep.subr.mxu0 0.0
      %476 = vmatpush1.msra.mxu0 0.0
      %477 = vmatprep.subr.mxu0 0.0
      %478 = vmatpush1.msra.mxu0 0.0
      %479 = vmatprep.subr.mxu0 0.0
      %480 = vmatpush1.msra.mxu0 0.0
      %481 = vmatprep.subr.mxu0 0.0
      %482 = vmatpush1.msra.mxu0 0.0
      %483 = vmatprep.subr.mxu0 0.0
      %484 = vmatpush1.msra.mxu0 0.0
      %485 = vmatprep.subr.mxu0 0.0
      %486 = vmatpush1.msra.mxu0 0.0
      %487 = vmatprep.subr.mxu0 0.0
      %488 = vmatpush1.msra.mxu0 0.0
      %489 = vmatprep.subr.mxu0 0.0
      %490 = vmatpush1.msra.mxu0 0.0
      %491 = vmatprep.mubr.f32.mxu0 0.0
      %492 = vmatmul.mubr.f32.gmra.mrb[0].mxu0 %v420
      %v493 = vpop.f32.mrb[0].mxu0
      %v494 = vadd.f32 0.0, %v493
      %v495 = vpop.f32.mrb[0].mxu0
      %v496 = vadd.f32 0.0, %v495
      %497 = vdwg.mxu0
      %v498 = vlaneseq
      %v499 = vshrl.u32 %v498, 7
      %v500 = vsub.s32 2, %v499
      %v501 = vrot.slane %v199, %v500
      %v502 = vlaneseq
      %v503 = vshrl.u32 %v502, 7
      %v504 = vsub.s32 2, %v503
      %v505 = vrot.slane %v200, %v504
      %v506 = vmul.f32 %v494, %v501
      %v507 = vmul.f32 %v496, %v505
      %v508 = vadd.f32 %v406, %v506
      %v509 = vadd.f32 %v407, %v507
      %s510 = scalar_lea.vmem %s1, 12
      %v511 = vld [vmem:[%s510] sm:$0x7]
      %512 = vrot.lane.b32.xlu0 %v205, 1
      %v513 = vpop.permute.xlu0 %512
      %515 = vrot.lane.b32.xlu0 %v198, 1
      %v516 = vpop.permute.xlu0 %515
      %vm517 = vcmask 7168
      %v518 = vsel %vm517, %v516, %v513
      %v520 = vsel %vm517, %v513, %v516
      %v522 = vsel %vm215, %v511, 0
      %v525 = vsel %vm219, %v520, 0
      %v527 = vsel %vm219, %v518, 0
      %529 = vmatprep.subr.mxu0 %v527
      %530 = vmatpush1.msra.mxu0 %v525
      %531 = vmatprep.subr.mxu0 0.0
      %532 = vmatpush1.msra.mxu0 0.0
      %533 = vmatprep.subr.mxu0 0.0
      %534 = vmatpush1.msra.mxu0 0.0
      %535 = vmatprep.subr.mxu0 0.0
      %536 = vmatpush1.msra.mxu0 0.0
      %537 = vmatprep.subr.mxu0 0.0
      %538 = vmatpush1.msra.mxu0 0.0
      %539 = vmatprep.subr.mxu0 0.0
      %540 = vmatpush1.msra.mxu0 0.0
      %541 = vmatprep.subr.mxu0 0.0
      %542 = vmatpush1.msra.mxu0 0.0
      %543 = vmatprep.subr.mxu0 0.0
      %544 = vmatpush1.msra.mxu0 0.0
      %545 = vmatprep.subr.mxu0 0.0
      %546 = vmatpush1.msra.mxu0 0.0
      %547 = vmatprep.subr.mxu0 0.0
      %548 = vmatpush1.msra.mxu0 0.0
      %549 = vmatprep.subr.mxu0 0.0
      %550 = vmatpush1.msra.mxu0 0.0
      %551 = vmatprep.subr.mxu0 0.0
      %552 = vmatpush1.msra.mxu0 0.0
      %553 = vmatprep.subr.mxu0 0.0
      %554 = vmatpush1.msra.mxu0 0.0
      %555 = vmatprep.subr.mxu0 0.0
      %556 = vmatpush1.msra.mxu0 0.0
      %557 = vmatprep.subr.mxu0 0.0
      %558 = vmatpush1.msra.mxu0 0.0
      %559 = vmatprep.subr.mxu0 0.0
      %560 = vmatpush1.msra.mxu0 0.0
      %561 = vmatprep.subr.mxu0 0.0
      %562 = vmatpush1.msra.mxu0 0.0
      %563 = vmatprep.subr.mxu0 0.0
      %564 = vmatpush1.msra.mxu0 0.0
      %565 = vmatprep.subr.mxu0 0.0
      %566 = vmatpush1.msra.mxu0 0.0
      %567 = vmatprep.subr.mxu0 0.0
      %568 = vmatpush1.msra.mxu0 0.0
      %569 = vmatprep.subr.mxu0 0.0
      %570 = vmatpush1.msra.mxu0 0.0
      %571 = vmatprep.subr.mxu0 0.0
      %572 = vmatpush1.msra.mxu0 0.0
      %573 = vmatprep.subr.mxu0 0.0
      %574 = vmatpush1.msra.mxu0 0.0
      %575 = vmatprep.subr.mxu0 0.0
      %576 = vmatpush1.msra.mxu0 0.0
      %577 = vmatprep.subr.mxu0 0.0
      %578 = vmatpush1.msra.mxu0 0.0
      %579 = vmatprep.subr.mxu0 0.0
      %580 = vmatpush1.msra.mxu0 0.0
      %581 = vmatprep.subr.mxu0 0.0
      %582 = vmatpush1.msra.mxu0 0.0
      %583 = vmatprep.subr.mxu0 0.0
      %584 = vmatpush1.msra.mxu0 0.0
      %585 = vmatprep.subr.mxu0 0.0
      %586 = vmatpush1.msra.mxu0 0.0
      %587 = vmatprep.subr.mxu0 0.0
      %588 = vmatpush1.msra.mxu0 0.0
      %589 = vmatprep.subr.mxu0 0.0
      %590 = vmatpush1.msra.mxu0 0.0
      %591 = vmatprep.subr.mxu0 0.0
      %592 = vmatpush1.msra.mxu0 0.0
      %593 = vmatprep.mubr.f32.mxu0 0.0
      %594 = vmatmul.mubr.f32.gmra.mrb[0].mxu0 %v522
      %v595 = vpop.f32.mrb[0].mxu0
      %v596 = vadd.f32 0.0, %v595
      %v597 = vpop.f32.mrb[0].mxu0
      %v598 = vadd.f32 0.0, %v597
      %599 = vdwg.mxu0
      %v600 = vlaneseq
      %v601 = vshrl.u32 %v600, 7
      %v602 = vsub.s32 3, %v601
      %v603 = vrot.slane %v199, %v602
      %v604 = vlaneseq
      %v605 = vshrl.u32 %v604, 7
      %v606 = vsub.s32 3, %v605
      %v607 = vrot.slane %v200, %v606
      %v608 = vmul.f32 %v596, %v603
      %v609 = vmul.f32 %v598, %v607
      %v610 = vadd.f32 %v508, %v608
      %v611 = vadd.f32 %v509, %v609
      %s612 = scalar_lea.vmem %s1, 16
      %v613 = vld [vmem:[%s612] sm:$0x7]
      %v615 = vsel %vm215, %v613, 0
      %v617 = vsel %vm219, %v198, 0
      %v619 = vsel %vm219, %v205, 0
      %621 = vmatprep.subr.mxu0 %v619
      %622 = vmatpush1.msra.mxu0 %v617
      %623 = vmatprep.subr.mxu0 0.0
      %624 = vmatpush1.msra.mxu0 0.0
      %625 = vmatprep.subr.mxu0 0.0
      %626 = vmatpush1.msra.mxu0 0.0
      %627 = vmatprep.subr.mxu0 0.0
      %628 = vmatpush1.msra.mxu0 0.0
      %629 = vmatprep.subr.mxu0 0.0
      %630 = vmatpush1.msra.mxu0 0.0
      %631 = vmatprep.subr.mxu0 0.0
      %632 = vmatpush1.msra.mxu0 0.0
      %633 = vmatprep.subr.mxu0 0.0
      %634 = vmatpush1.msra.mxu0 0.0
      %635 = vmatprep.subr.mxu0 0.0
      %636 = vmatpush1.msra.mxu0 0.0
      %637 = vmatprep.subr.mxu0 0.0
      %638 = vmatpush1.msra.mxu0 0.0
      %639 = vmatprep.subr.mxu0 0.0
      %640 = vmatpush1.msra.mxu0 0.0
      %641 = vmatprep.subr.mxu0 0.0
      %642 = vmatpush1.msra.mxu0 0.0
      %643 = vmatprep.subr.mxu0 0.0
      %644 = vmatpush1.msra.mxu0 0.0
      %645 = vmatprep.subr.mxu0 0.0
      %646 = vmatpush1.msra.mxu0 0.0
      %647 = vmatprep.subr.mxu0 0.0
      %648 = vmatpush1.msra.mxu0 0.0
      %649 = vmatprep.subr.mxu0 0.0
      %650 = vmatpush1.msra.mxu0 0.0
      %651 = vmatprep.subr.mxu0 0.0
      %652 = vmatpush1.msra.mxu0 0.0
      %653 = vmatprep.subr.mxu0 0.0
      %654 = vmatpush1.msra.mxu0 0.0
      %655 = vmatprep.subr.mxu0 0.0
      %656 = vmatpush1.msra.mxu0 0.0
      %657 = vmatprep.subr.mxu0 0.0
      %658 = vmatpush1.msra.mxu0 0.0
      %659 = vmatprep.subr.mxu0 0.0
      %660 = vmatpush1.msra.mxu0 0.0
      %661 = vmatprep.subr.mxu0 0.0
      %662 = vmatpush1.msra.mxu0 0.0
      %663 = vmatprep.subr.mxu0 0.0
      %664 = vmatpush1.msra.mxu0 0.0
      %665 = vmatprep.subr.mxu0 0.0
      %666 = vmatpush1.msra.mxu0 0.0
      %667 = vmatprep.subr.mxu0 0.0
      %668 = vmatpush1.msra.mxu0 0.0
      %669 = vmatprep.subr.mxu0 0.0
      %670 = vmatpush1.msra.mxu0 0.0
      %671 = vmatprep.subr.mxu0 0.0
      %672 = vmatpush1.msra.mxu0 0.0
      %673 = vmatprep.subr.mxu0 0.0
      %674 = vmatpush1.msra.mxu0 0.0
      %675 = vmatprep.subr.mxu0 0.0
      %676 = vmatpush1.msra.mxu0 0.0
      %677 = vmatprep.subr.mxu0 0.0
      %678 = vmatpush1.msra.mxu0 0.0
      %679 = vmatprep.subr.mxu0 0.0
      %680 = vmatpush1.msra.mxu0 0.0
      %681 = vmatprep.subr.mxu0 0.0
      %682 = vmatpush1.msra.mxu0 0.0
      %683 = vmatprep.subr.mxu0 0.0
      %684 = vmatpush1.msra.mxu0 0.0
      %685 = vmatprep.mubr.f32.mxu0 0.0
      %686 = vmatmul.mubr.f32.gmra.mrb[0].mxu0 %v615
      %v687 = vpop.f32.mrb[0].mxu0
      %v688 = vadd.f32 0.0, %v687
      %v689 = vpop.f32.mrb[0].mxu0
      %v690 = vadd.f32 0.0, %v689
      %691 = vdwg.mxu0
      %v692 = vadd.f32 %v610, %v688
      %v693 = vadd.f32 %v611, %v690
      %s694 = scalar_lea.vmem %s1, 20
      %v695 = vld [vmem:[%s694] sm:$0x7]
      %696 = vrot.lane.b32.xlu0 %v198, 127
      %v697 = vpop.permute.xlu0 %696
      %698 = vrot.lane.b32.xlu0 %v205, 127
      %v699 = vpop.permute.xlu0 %698
      %vm700 = vcmask 1039360
      %v701 = vsel %vm700, %v697, %v699
      %v704 = vsel %vm700, %v699, %v697
      %v706 = vsel %vm215, %v695, 0
      %v708 = vsel %vm219, %v701, 0
      %v711 = vsel %vm219, %v704, 0
      %713 = vmatprep.subr.mxu0 %v711
      %714 = vmatpush1.msra.mxu0 %v708
      %715 = vmatprep.subr.mxu0 0.0
      %716 = vmatpush1.msra.mxu0 0.0
      %717 = vmatprep.subr.mxu0 0.0
      %718 = vmatpush1.msra.mxu0 0.0
      %719 = vmatprep.subr.mxu0 0.0
      %720 = vmatpush1.msra.mxu0 0.0
      %721 = vmatprep.subr.mxu0 0.0
      %722 = vmatpush1.msra.mxu0 0.0
      %723 = vmatprep.subr.mxu0 0.0
      %724 = vmatpush1.msra.mxu0 0.0
      %725 = vmatprep.subr.mxu0 0.0
      %726 = vmatpush1.msra.mxu0 0.0
      %727 = vmatprep.subr.mxu0 0.0
      %728 = vmatpush1.msra.mxu0 0.0
      %729 = vmatprep.subr.mxu0 0.0
      %730 = vmatpush1.msra.mxu0 0.0
      %731 = vmatprep.subr.mxu0 0.0
      %732 = vmatpush1.msra.mxu0 0.0
      %733 = vmatprep.subr.mxu0 0.0
      %734 = vmatpush1.msra.mxu0 0.0
      %735 = vmatprep.subr.mxu0 0.0
      %736 = vmatpush1.msra.mxu0 0.0
      %737 = vmatprep.subr.mxu0 0.0
      %738 = vmatpush1.msra.mxu0 0.0
      %739 = vmatprep.subr.mxu0 0.0
      %740 = vmatpush1.msra.mxu0 0.0
      %741 = vmatprep.subr.mxu0 0.0
      %742 = vmatpush1.msra.mxu0 0.0
      %743 = vmatprep.subr.mxu0 0.0
      %744 = vmatpush1.msra.mxu0 0.0
      %745 = vmatprep.subr.mxu0 0.0
      %746 = vmatpush1.msra.mxu0 0.0
      %747 = vmatprep.subr.mxu0 0.0
      %748 = vmatpush1.msra.mxu0 0.0
      %749 = vmatprep.subr.mxu0 0.0
      %750 = vmatpush1.msra.mxu0 0.0
      %751 = vmatprep.subr.mxu0 0.0
      %752 = vmatpush1.msra.mxu0 0.0
      %753 = vmatprep.subr.mxu0 0.0
      %754 = vmatpush1.msra.mxu0 0.0
      %755 = vmatprep.subr.mxu0 0.0
      %756 = vmatpush1.msra.mxu0 0.0
      %757 = vmatprep.subr.mxu0 0.0
      %758 = vmatpush1.msra.mxu0 0.0
      %759 = vmatprep.subr.mxu0 0.0
      %760 = vmatpush1.msra.mxu0 0.0
      %761 = vmatprep.subr.mxu0 0.0
      %762 = vmatpush1.msra.mxu0 0.0
      %763 = vmatprep.subr.mxu0 0.0
      %764 = vmatpush1.msra.mxu0 0.0
      %765 = vmatprep.subr.mxu0 0.0
      %766 = vmatpush1.msra.mxu0 0.0
      %767 = vmatprep.subr.mxu0 0.0
      %768 = vmatpush1.msra.mxu0 0.0
      %769 = vmatprep.subr.mxu0 0.0
      %770 = vmatpush1.msra.mxu0 0.0
      %771 = vmatprep.subr.mxu0 0.0
      %772 = vmatpush1.msra.mxu0 0.0
      %773 = vmatprep.subr.mxu0 0.0
      %774 = vmatpush1.msra.mxu0 0.0
      %775 = vmatprep.subr.mxu0 0.0
      %776 = vmatpush1.msra.mxu0 0.0
      %777 = vmatprep.mubr.f32.mxu0 0.0
      %778 = vmatmul.mubr.f32.gmra.mrb[0].mxu0 %v706
      %v779 = vpop.f32.mrb[0].mxu0
      %v780 = vadd.f32 0.0, %v779
      %v781 = vpop.f32.mrb[0].mxu0
      %v782 = vadd.f32 0.0, %v781
      %783 = vdwg.mxu0
      %v784 = vlaneseq
      %v785 = vshrl.u32 %v784, 7
      %v786 = vsub.s32 5, %v785
      %v787 = vrot.slane %v199, %v786
      %v788 = vlaneseq
      %v789 = vshrl.u32 %v788, 7
      %v790 = vsub.s32 5, %v789
      %v791 = vrot.slane %v200, %v790
      %v792 = vmul.f32 %v780, %v787
      %v793 = vmul.f32 %v782, %v791
      %v794 = vadd.f32 %v692, %v792
      %v795 = vadd.f32 %v693, %v793
      %s796 = scalar_lea.vmem %s1, 24
      %v797 = vld [vmem:[%s796] sm:$0x7]
      %798 = vrot.lane.b32.xlu0 %v198, 113
      %v799 = vpop.permute.xlu0 %798
      %800 = vrot.lane.b32.xlu0 %v205, 113
      %v801 = vpop.permute.xlu0 %800
      %vm802 = vcmask 924672
      %v803 = vsel %vm802, %v799, %v801
      %v806 = vsel %vm802, %v801, %v799
      %v808 = vsel %vm215, %v797, 0
      %v810 = vsel %vm219, %v803, 0
      %v813 = vsel %vm219, %v806, 0
      %815 = vmatprep.subr.mxu0 %v813
      %816 = vmatpush1.msra.mxu0 %v810
      %817 = vmatprep.subr.mxu0 0.0
      %818 = vmatpush1.msra.mxu0 0.0
      %819 = vmatprep.subr.mxu0 0.0
      %820 = vmatpush1.msra.mxu0 0.0
      %821 = vmatprep.subr.mxu0 0.0
      %822 = vmatpush1.msra.mxu0 0.0
      %823 = vmatprep.subr.mxu0 0.0
      %824 = vmatpush1.msra.mxu0 0.0
      %825 = vmatprep.subr.mxu0 0.0
      %826 = vmatpush1.msra.mxu0 0.0
      %827 = vmatprep.subr.mxu0 0.0
      %828 = vmatpush1.msra.mxu0 0.0
      %829 = vmatprep.subr.mxu0 0.0
      %830 = vmatpush1.msra.mxu0 0.0
      %831 = vmatprep.subr.mxu0 0.0
      %832 = vmatpush1.msra.mxu0 0.0
      %833 = vmatprep.subr.mxu0 0.0
      %834 = vmatpush1.msra.mxu0 0.0
      %835 = vmatprep.subr.mxu0 0.0
      %836 = vmatpush1.msra.mxu0 0.0
      %837 = vmatprep.subr.mxu0 0.0
      %838 = vmatpush1.msra.mxu0 0.0
      %839 = vmatprep.subr.mxu0 0.0
      %840 = vmatpush1.msra.mxu0 0.0
      %841 = vmatprep.subr.mxu0 0.0
      %842 = vmatpush1.msra.mxu0 0.0
      %843 = vmatprep.subr.mxu0 0.0
      %844 = vmatpush1.msra.mxu0 0.0
      %845 = vmatprep.subr.mxu0 0.0
      %846 = vmatpush1.msra.mxu0 0.0
      %847 = vmatprep.subr.mxu0 0.0
      %848 = vmatpush1.msra.mxu0 0.0
      %849 = vmatprep.subr.mxu0 0.0
      %850 = vmatpush1.msra.mxu0 0.0
      %851 = vmatprep.subr.mxu0 0.0
      %852 = vmatpush1.msra.mxu0 0.0
      %853 = vmatprep.subr.mxu0 0.0
      %854 = vmatpush1.msra.mxu0 0.0
      %855 = vmatprep.subr.mxu0 0.0
      %856 = vmatpush1.msra.mxu0 0.0
      %857 = vmatprep.subr.mxu0 0.0
      %858 = vmatpush1.msra.mxu0 0.0
      %859 = vmatprep.subr.mxu0 0.0
      %860 = vmatpush1.msra.mxu0 0.0
      %861 = vmatprep.subr.mxu0 0.0
      %862 = vmatpush1.msra.mxu0 0.0
      %863 = vmatprep.subr.mxu0 0.0
      %864 = vmatpush1.msra.mxu0 0.0
      %865 = vmatprep.subr.mxu0 0.0
      %866 = vmatpush1.msra.mxu0 0.0
      %867 = vmatprep.subr.mxu0 0.0
      %868 = vmatpush1.msra.mxu0 0.0
      %869 = vmatprep.subr.mxu0 0.0
      %870 = vmatpush1.msra.mxu0 0.0
      %871 = vmatprep.subr.mxu0 0.0
      %872 = vmatpush1.msra.mxu0 0.0
      %873 = vmatprep.subr.mxu0 0.0
      %874 = vmatpush1.msra.mxu0 0.0
      %875 = vmatprep.subr.mxu0 0.0
      %876 = vmatpush1.msra.mxu0 0.0
      %877 = vmatprep.subr.mxu0 0.0
      %878 = vmatpush1.msra.mxu0 0.0
      %879 = vmatprep.mubr.f32.mxu0 0.0
      %880 = vmatmul.mubr.f32.gmra.mrb[0].mxu0 %v808
      %v881 = vpop.f32.mrb[0].mxu0
      %v882 = vadd.f32 0.0, %v881
      %v883 = vpop.f32.mrb[0].mxu0
      %v884 = vadd.f32 0.0, %v883
      %885 = vdwg.mxu0
      %v886 = vlaneseq
      %v887 = vshrl.u32 %v886, 7
      %v888 = vsub.s32 6, %v887
      %v889 = vrot.slane %v199, %v888
      %v890 = vlaneseq
      %v891 = vshrl.u32 %v890, 7
      %v892 = vsub.s32 6, %v891
      %v893 = vrot.slane %v200, %v892
      %v894 = vmul.f32 %v882, %v889
      %v895 = vmul.f32 %v884, %v893
      %v896 = vadd.f32 %v794, %v894
      %v897 = vadd.f32 %v795, %v895
      %s898 = scalar_lea.vmem %s1, 28
      %v899 = vld [vmem:[%s898] sm:$0x7]
      %900 = vrot.lane.b32.xlu0 %v198, 112
      %v901 = vpop.permute.xlu0 %900
      %902 = vrot.lane.b32.xlu0 %v205, 112
      %v903 = vpop.permute.xlu0 %902
      %vm904 = vcmask 916480
      %v905 = vsel %vm904, %v901, %v903
      %v908 = vsel %vm904, %v903, %v901
      %v910 = vsel %vm215, %v899, 0
      %v912 = vsel %vm219, %v905, 0
      %v915 = vsel %vm219, %v908, 0
      %917 = vmatprep.subr.mxu0 %v915
      %918 = vmatpush1.msra.mxu0 %v912
      %919 = vmatprep.subr.mxu0 0.0
      %920 = vmatpush1.msra.mxu0 0.0
      %921 = vmatprep.subr.mxu0 0.0
      %922 = vmatpush1.msra.mxu0 0.0
      %923 = vmatprep.subr.mxu0 0.0
      %924 = vmatpush1.msra.mxu0 0.0
      %925 = vmatprep.subr.mxu0 0.0
      %926 = vmatpush1.msra.mxu0 0.0
      %927 = vmatprep.subr.mxu0 0.0
      %928 = vmatpush1.msra.mxu0 0.0
      %929 = vmatprep.subr.mxu0 0.0
      %930 = vmatpush1.msra.mxu0 0.0
      %931 = vmatprep.subr.mxu0 0.0
      %932 = vmatpush1.msra.mxu0 0.0
      %933 = vmatprep.subr.mxu0 0.0
      %934 = vmatpush1.msra.mxu0 0.0
      %935 = vmatprep.subr.mxu0 0.0
      %936 = vmatpush1.msra.mxu0 0.0
      %937 = vmatprep.subr.mxu0 0.0
      %938 = vmatpush1.msra.mxu0 0.0
      %939 = vmatprep.subr.mxu0 0.0
      %940 = vmatpush1.msra.mxu0 0.0
      %941 = vmatprep.subr.mxu0 0.0
      %942 = vmatpush1.msra.mxu0 0.0
      %943 = vmatprep.subr.mxu0 0.0
      %944 = vmatpush1.msra.mxu0 0.0
      %945 = vmatprep.subr.mxu0 0.0
      %946 = vmatpush1.msra.mxu0 0.0
      %947 = vmatprep.subr.mxu0 0.0
      %948 = vmatpush1.msra.mxu0 0.0
      %949 = vmatprep.subr.mxu0 0.0
      %950 = vmatpush1.msra.mxu0 0.0
      %951 = vmatprep.subr.mxu0 0.0
      %952 = vmatpush1.msra.mxu0 0.0
      %953 = vmatprep.subr.mxu0 0.0
      %954 = vmatpush1.msra.mxu0 0.0
      %955 = vmatprep.subr.mxu0 0.0
      %956 = vmatpush1.msra.mxu0 0.0
      %957 = vmatprep.subr.mxu0 0.0
      %958 = vmatpush1.msra.mxu0 0.0
      %959 = vmatprep.subr.mxu0 0.0
      %960 = vmatpush1.msra.mxu0 0.0
      %961 = vmatprep.subr.mxu0 0.0
      %962 = vmatpush1.msra.mxu0 0.0
      %963 = vmatprep.subr.mxu0 0.0
      %964 = vmatpush1.msra.mxu0 0.0
      %965 = vmatprep.subr.mxu0 0.0
      %966 = vmatpush1.msra.mxu0 0.0
      %967 = vmatprep.subr.mxu0 0.0
      %968 = vmatpush1.msra.mxu0 0.0
      %969 = vmatprep.subr.mxu0 0.0
      %970 = vmatpush1.msra.mxu0 0.0
      %971 = vmatprep.subr.mxu0 0.0
      %972 = vmatpush1.msra.mxu0 0.0
      %973 = vmatprep.subr.mxu0 0.0
      %974 = vmatpush1.msra.mxu0 0.0
      %975 = vmatprep.subr.mxu0 0.0
      %976 = vmatpush1.msra.mxu0 0.0
      %977 = vmatprep.subr.mxu0 0.0
      %978 = vmatpush1.msra.mxu0 0.0
      %979 = vmatprep.subr.mxu0 0.0
      %980 = vmatpush1.msra.mxu0 0.0
      %981 = vmatprep.mubr.f32.mxu0 0.0
      %982 = vmatmul.mubr.f32.gmra.mrb[0].mxu0 %v910
      %v983 = vpop.f32.mrb[0].mxu0
      %v984 = vadd.f32 0.0, %v983
      %v985 = vpop.f32.mrb[0].mxu0
      %v986 = vadd.f32 0.0, %v985
      %987 = vdwg.mxu0
      %v988 = vlaneseq
      %v989 = vshrl.u32 %v988, 7
      %v990 = vsub.s32 7, %v989
      %v991 = vrot.slane %v199, %v990
      %v992 = vlaneseq
      %v993 = vshrl.u32 %v992, 7
      %v994 = vsub.s32 7, %v993
      %v995 = vrot.slane %v200, %v994
      %v996 = vmul.f32 %v984, %v991
      %v997 = vmul.f32 %v986, %v995
      %v998 = vadd.f32 %v896, %v996
      %v999 = vadd.f32 %v897, %v997
      %s1000 = scalar_lea.vmem %s1, 32
      %v1001 = vld [vmem:[%s1000] sm:$0x7]
      %1002 = vrot.lane.b32.xlu0 %v198, 111
      %v1003 = vpop.permute.xlu0 %1002
      %1004 = vrot.lane.b32.xlu0 %v205, 111
      %v1005 = vpop.permute.xlu0 %1004
      %vm1006 = vcmask 908288
      %v1007 = vsel %vm1006, %v1003, %v1005
      %v1010 = vsel %vm1006, %v1005, %v1003
      %v1012 = vsel %vm215, %v1001, 0
      %v1014 = vsel %vm219, %v1007, 0
      %v1017 = vsel %vm219, %v1010, 0
      %1019 = vmatprep.subr.mxu0 %v1017
      %1020 = vmatpush1.msra.mxu0 %v1014
      %1021 = vmatprep.subr.mxu0 0.0
      %1022 = vmatpush1.msra.mxu0 0.0
      %1023 = vmatprep.subr.mxu0 0.0
      %1024 = vmatpush1.msra.mxu0 0.0
      %1025 = vmatprep.subr.mxu0 0.0
      %1026 = vmatpush1.msra.mxu0 0.0
      %1027 = vmatprep.subr.mxu0 0.0
      %1028 = vmatpush1.msra.mxu0 0.0
      %1029 = vmatprep.subr.mxu0 0.0
      %1030 = vmatpush1.msra.mxu0 0.0
      %1031 = vmatprep.subr.mxu0 0.0
      %1032 = vmatpush1.msra.mxu0 0.0
      %1033 = vmatprep.subr.mxu0 0.0
      %1034 = vmatpush1.msra.mxu0 0.0
      %1035 = vmatprep.subr.mxu0 0.0
      %1036 = vmatpush1.msra.mxu0 0.0
      %1037 = vmatprep.subr.mxu0 0.0
      %1038 = vmatpush1.msra.mxu0 0.0
      %1039 = vmatprep.subr.mxu0 0.0
      %1040 = vmatpush1.msra.mxu0 0.0
      %1041 = vmatprep.subr.mxu0 0.0
      %1042 = vmatpush1.msra.mxu0 0.0
      %1043 = vmatprep.subr.mxu0 0.0
      %1044 = vmatpush1.msra.mxu0 0.0
      %1045 = vmatprep.subr.mxu0 0.0
      %1046 = vmatpush1.msra.mxu0 0.0
      %1047 = vmatprep.subr.mxu0 0.0
      %1048 = vmatpush1.msra.mxu0 0.0
      %1049 = vmatprep.subr.mxu0 0.0
      %1050 = vmatpush1.msra.mxu0 0.0
      %1051 = vmatprep.subr.mxu0 0.0
      %1052 = vmatpush1.msra.mxu0 0.0
      %1053 = vmatprep.subr.mxu0 0.0
      %1054 = vmatpush1.msra.mxu0 0.0
      %1055 = vmatprep.subr.mxu0 0.0
      %1056 = vmatpush1.msra.mxu0 0.0
      %1057 = vmatprep.subr.mxu0 0.0
      %1058 = vmatpush1.msra.mxu0 0.0
      %1059 = vmatprep.subr.mxu0 0.0
      %1060 = vmatpush1.msra.mxu0 0.0
      %1061 = vmatprep.subr.mxu0 0.0
      %1062 = vmatpush1.msra.mxu0 0.0
      %1063 = vmatprep.subr.mxu0 0.0
      %1064 = vmatpush1.msra.mxu0 0.0
      %1065 = vmatprep.subr.mxu0 0.0
      %1066 = vmatpush1.msra.mxu0 0.0
      %1067 = vmatprep.subr.mxu0 0.0
      %1068 = vmatpush1.msra.mxu0 0.0
      %1069 = vmatprep.subr.mxu0 0.0
      %1070 = vmatpush1.msra.mxu0 0.0
      %1071 = vmatprep.subr.mxu0 0.0
      %1072 = vmatpush1.msra.mxu0 0.0
      %1073 = vmatprep.subr.mxu0 0.0
      %1074 = vmatpush1.msra.mxu0 0.0
      %1075 = vmatprep.subr.mxu0 0.0
      %1076 = vmatpush1.msra.mxu0 0.0
      %1077 = vmatprep.subr.mxu0 0.0
      %1078 = vmatpush1.msra.mxu0 0.0
      %1079 = vmatprep.subr.mxu0 0.0
      %1080 = vmatpush1.msra.mxu0 0.0
      %1081 = vmatprep.subr.mxu0 0.0
      %1082 = vmatpush1.msra.mxu0 0.0
      %1083 = vmatprep.mubr.f32.mxu0 0.0
      %1084 = vmatmul.mubr.f32.gmra.mrb[0].mxu0 %v1012
      %v1085 = vpop.f32.mrb[0].mxu0
      %v1086 = vadd.f32 0.0, %v1085
      %v1087 = vpop.f32.mrb[0].mxu0
      %v1088 = vadd.f32 0.0, %v1087
      %1089 = vdwg.mxu0
      %v1090 = vlaneseq
      %v1091 = vshrl.u32 %v1090, 7
      %v1092 = vsub.s32 0, %v1091
      %v1093 = vrot.slane %v201, %v1092
      %v1094 = vlaneseq
      %v1095 = vshrl.u32 %v1094, 7
      %v1096 = vsub.s32 0, %v1095
      %v1097 = vrot.slane %v202, %v1096
      %v1098 = vmul.f32 %v1086, %v1093
      %v1099 = vmul.f32 %v1088, %v1097
      %v1100 = vadd.f32 %v998, %v1098
      %v1101 = vadd.f32 %v999, %v1099
      %v1102 = vld [vmem:[%s2] sm:$0x7]
      %1104 = vset.pattern.permute.xlu0 0
      %1105 = vperm.xlu0 %1104, %v1102
      %v1106 = vpop.permute.xlu0 %1105
      %v1108 = vadd.f32 %v1100, %v1106
      %v1109 = vadd.f32 %v1101, %v1106
      %v1112 = vcombine.low %v1108, %v1109
      %1114 = vst [vmem:[%s197] sm:$0x77] %v1112
      %p1115 = scmp.lt.s32.totalorder %s15, 1
      %s1116 = scalar_select %p1115, %s15, 1
      %s1117 = smul.addr %s1116, 2
      %s1118 = smul.addr %s1117, 4
      %s1119 = scalar_lea.vmem %s4, %s1118
      // Predicated region
      $region37: #{tpu_custom_call.1} parent=35 // pred_check
        %p1120 = pneg %p122
      $region38: #{tpu_custom_call.1} parent=35 // pred_check_branch
        %1122 = sbr.rel (%p1120) target = $region40
      $region39: #{tpu_custom_call.1} parent=35 // pred_region
        _
      $region40: #{tpu_custom_call.1} parent=35 // pred_fallthru
        _
    $region36: #{tpu_custom_call.1} parent=5 // pred_fallthru
      _
    %p1123 = scmp.le.s32.totalorder 2, %s10
    // Predicated region
    $region41: #{tpu_custom_call.1} parent=5 // pred_check
      %p1124 = pneg %p1123
    $region42: #{tpu_custom_call.1} parent=5 // pred_check_branch
      %1126 = sbr.rel (%p1124) target = $region44
    $region43: #{tpu_custom_call.1} parent=5 // pred_region
      %s1127 = ssub.s32 %s10, 2
      // Predicated region
      $region45: #{tpu_custom_call.1} parent=43 // pred_check
        %p1128 = pneg %p128
      $region46: #{tpu_custom_call.1} parent=43 // pred_check_branch
        %1130 = sbr.rel (%p1128) target = $region48
      $region47: #{tpu_custom_call.1} parent=43 // pred_region
        %p1131 = scmp.lt.s32.totalorder %s16, 1
        %s1132 = scalar_select %p1131, %s16, 1
        %s1133 = smul.addr %s1132, 2
        %s1134 = smul.addr %s1133, 4
        %s1135 = scalar_lea.vmem %s4, %s1134
      $region48: #{tpu_custom_call.1} parent=43 // pred_fallthru
        _
    $region44: #{tpu_custom_call.1} parent=5 // pred_fallthru
      _
  $region6: #{tpu_custom_call.1} parent=0 // loop_footer
    %s14 = sadd.s32 1, %s10
  $region7: #{tpu_custom_call.1} parent=0 // loop_footer_branch
    %9 = sbr.rel target = $region3
  $region8: #{tpu_custom_call.1} parent=0 // loop_exit
    _

</llo_original>
